<compile_context>
chip_gen: v7x
topology: tpu7x:2x2x1
jax: 0.10.0
libtpu: 0.0.40
codegen_flags: <defaults>
</compile_context>

<pallas_src>
import jax
import jax.numpy as jnp
from jax.experimental import pallas as pl
from jax.experimental.pallas import tpu as pltpu


LEAKY_SLOPE = 0.01   # torch.nn.LeakyReLU default negative_slope
BN_EPS = 1e-5        # torch.nn.BatchNorm1d default eps
LANE = 128           # TPU lane width


def _round_up(x, m):
    return (x + m - 1) // m * m


def _padded_dims(num_params, encoded_dimension):
    in_pad = _round_up(max(num_params, 1), 8)
    enc_pad = _round_up(max(encoded_dimension, 1), 8)
    f_hid = _round_up(25, 8)            # max hidden width of (10, 25, 10) -> 32
    return in_pad, f_hid, enc_pad


def _make_kernel(batch, dims_padded):
    """Kernel with true batch size + per-layer padded dims baked in statically."""
    inv_b = 1.0 / float(batch)
    f_hid = dims_padded[0][1]

    def kernel(x_ref, w_ref, b_ref, out_ref):
        b_pad = x_ref.shape[0]                  # batch-major input [B_pad, in_pad]

        # Hoisted lane-validity mask (which lanes are real batch rows), built
        # once at the hidden width and reused by all three BN blocks.
        lane_idx = jax.lax.broadcasted_iota(jnp.int32, (f_hid, b_pad), 1)
        maskf = (lane_idx < batch).astype(jnp.float32)

        x = x_ref[...]                          # [B_pad, in_pad], f32
        h = None
        for layer in range(4):                  # Python-unrolled (4 iters)
            in_p, out_p = dims_padded[layer]
            w = w_ref[layer, :out_p, :in_p]     # static slice of packed weights
            b = b_ref[layer, :out_p]            # [out_p, 1]
            if layer == 0:
                # Fold the input transpose into the MXU: h = w0 @ x^T
                h = jax.lax.dot_general(
                    w, x, (((1,), (1,)), ((), ())),
                    preferred_element_type=jnp.float32) + b
            else:
                h = jnp.dot(w, h, preferred_element_type=jnp.float32) + b
            if layer < 3:
                # LeakyReLU (slope < 1 -> mul + max form)
                h = jnp.maximum(h, LEAKY_SLOPE * h)
                # BatchNorm1d (training): biased batch stats over the lane axis,
                # two-pass variance, padded lanes masked out of the statistics.
                hm = h * maskf
                mean = jnp.sum(hm, axis=1, keepdims=True) * inv_b
                d = h - mean
                dm = d * maskf
                var = jnp.sum(dm * dm, axis=1, keepdims=True) * inv_b
                h = d * jax.lax.rsqrt(var + BN_EPS)
            # layer 3 (ff4): apply_f=False -> no activation, no BN
        out_ref[...] = h                        # [enc_pad, B_pad]

    return kernel


def pack_params(params, num_params, encoded_dimension):
    """Pack 4 Linear layers (torch [out, in] layout) into two padded operands."""
    dims = [(num_params, 10), (10, 25), (25, 10), (10, encoded_dimension)]
    in_pad, f_hid, enc_pad = _padded_dims(num_params, encoded_dimension)
    F = max(in_pad, f_hid, enc_pad)
    wp = jnp.zeros((4, F, F), jnp.float32)
    bp = jnp.zeros((4, F, 1), jnp.float32)
    for i, (fi, fo) in enumerate(dims):
        wp = wp.at[i, :fo, :fi].set(params[f"w{i + 1}"])   # [out, in]
        bp = bp.at[i, :fo, 0].set(params[f"b{i + 1}"])     # [out]
    return wp, bp


def deep_feed_forward_network(y, w_packed, b_packed, num_params, encoded_dimension):
    """y: [B, num_params] f32. Returns [B, encoded_dimension] f32."""
    B = y.shape[0]
    in_pad, f_hid, enc_pad = _padded_dims(num_params, encoded_dimension)
    B_pad = _round_up(max(B, LANE), LANE)

    # Batch-major, zero-padded input (no transpose pass; the transpose is folded
    # into the first matmul inside the kernel).
    x = jnp.zeros((B_pad, in_pad), jnp.float32).at[:B, :num_params].set(y)

    dims_padded = [(in_pad, f_hid), (f_hid, f_hid), (f_hid, f_hid), (f_hid, enc_pad)]

    flops = 2 * B * (num_params * 10 + 10 * 25 + 25 * 10 + 10 * encoded_dimension)
    bytes_accessed = 4 * (x.size + w_packed.size + b_packed.size + enc_pad * B_pad)

    # Resident VMEM footprint: in + out + params + ~6 live [f_hid, B_pad] f32
    # temporaries (mask, h, hm/d/dm, BN scratch).  2x margin, capped at 64 MiB
    # so the same limit is valid on v7x as well as v5e/v6e.
    live_bytes = 4 * (x.size + w_packed.size + b_packed.size
                      + enc_pad * B_pad + 6 * f_hid * B_pad)
    vmem_limit = min(max(2 * live_bytes, 4 << 20), 64 << 20)

    vmem = pl.BlockSpec(memory_space=pltpu.MemorySpace.VMEM)
    out = pl.pallas_call(
        _make_kernel(B, dims_padded),
        out_shape=jax.ShapeDtypeStruct((enc_pad, B_pad), jnp.float32),
        in_specs=[vmem, vmem, vmem],
        out_specs=vmem,
        compiler_params=pltpu.CompilerParams(vmem_limit_bytes=vmem_limit),
        cost_estimate=pl.CostEstimate(
            flops=flops, transcendentals=3 * f_hid, bytes_accessed=bytes_accessed),
    )(x, w_packed, b_packed)

    # Back to the PyTorch-facing [B, encoded_dimension] layout.  Downstream
    # consumers that accept feature-major [enc, B] should take `out` directly
    # and skip this transpose (it is an extra HBM round trip of the result).
    return out[:encoded_dimension, :B].T


# --------------------------- init & reference -------------------------------

def init_params(key, num_params, encoded_dimension):
    """Torch-layout ([out, in]) weights: xavier_uniform_ W, default-init bias."""
    dims = [(num_params, 10), (10, 25), (25, 10), (10, encoded_dimension)]
    keys = jax.random.split(key, 2 * len(dims))
    params = {}
    for i, (fi, fo) in enumerate(dims, start=1):
        bw = (6.0 / (fi + fo)) ** 0.5
        params[f"w{i}"] = jax.random.uniform(
            keys[2 * (i - 1)], (fo, fi), jnp.float32, -bw, bw)
        bb = 1.0 / (fi ** 0.5)
        params[f"b{i}"] = jax.random.uniform(
            keys[2 * (i - 1) + 1], (fo,), jnp.float32, -bb, bb)
    return params


def reference_forward(y, p):
    """Pure-JAX reference: exact PyTorch training-mode math, batch-major."""
    def lrelu(x):
        return jnp.where(x >= 0, x, LEAKY_SLOPE * x)

    def bn(x):
        mean = jnp.mean(x, axis=0, keepdims=True)
        var = jnp.mean((x - mean) ** 2, axis=0, keepdims=True)
        return (x - mean) * jax.lax.rsqrt(var + BN_EPS)

    h = bn(lrelu(y @ p["w1"].T + p["b1"]))
    h = bn(lrelu(h @ p["w2"].T + p["b2"]))
    h = bn(lrelu(h @ p["w3"].T + p["b3"]))
    return h @ p["w4"].T + p["b4"]


if __name__ == "__main__":
    num_params = 4         # input feature dimension of ff1
    encoded_dimension = 16
    batch = 8

    key = jax.random.PRNGKey(0)
    k_x, k_p = jax.random.split(key)
    y = jax.random.normal(k_x, (batch, num_params), jnp.float32)
    params = init_params(k_p, num_params, encoded_dimension)
    w_packed, b_packed = pack_params(params, num_params, encoded_dimension)

    out = deep_feed_forward_network(y, w_packed, b_packed, num_params,
                                    encoded_dimension)
    out = jax.block_until_ready(out)

    ref = reference_forward(y, params)
    assert out.shape == (batch, encoded_dimension)
    assert jnp.allclose(out, ref, atol=1e-4, rtol=1e-4)

    print("KERNEL_OK")
</pallas_src>

<mosaic_0001>
module attributes {stable_mosaic.version = 11 : i64} {
  func.func @kernel(%arg0: memref<128x8xf32, #tpu.memory_space<vmem>>, %arg1: memref<4x32x32xf32, #tpu.memory_space<vmem>>, %arg2: memref<4x32x1xf32, #tpu.memory_space<vmem>>, %arg3: memref<16x128xf32, #tpu.memory_space<vmem>>) attributes {dimension_semantics = [], scalar_prefetch = 0 : i64, scratch_operands = 0 : i64, tpu.core_type = #tpu.core_type<tc>} {
    %0 = tpu.iota {dimensions = array<i32: 1>} : vector<32x128xi32>
    %c8_i32 = arith.constant 8 : i32
    %1 = vector.broadcast %c8_i32 : i32 to vector<32x128xi32>
    %2 = arith.cmpi slt, %0, %1 : vector<32x128xi32>
    %3 = arith.extui %2 : vector<32x128xi1> to vector<32x128xi32>
    %4 = arith.sitofp %3 : vector<32x128xi32> to vector<32x128xf32>
    %c0 = arith.constant 0 : index
    %c0_0 = arith.constant 0 : index
    %5 = vector.load %arg0[%c0, %c0_0] : memref<128x8xf32, #tpu.memory_space<vmem>>, vector<128x8xf32>
    %c0_1 = arith.constant 0 : index
    %c0_2 = arith.constant 0 : index
    %c0_3 = arith.constant 0 : index
    %6 = vector.load %arg1[%c0_1, %c0_2, %c0_3] : memref<4x32x32xf32, #tpu.memory_space<vmem>>, vector<1x32x8xf32>
    %7 = vector.shape_cast %6 : vector<1x32x8xf32> to vector<32x8xf32>
    %c0_4 = arith.constant 0 : index
    %c0_5 = arith.constant 0 : index
    %c0_6 = arith.constant 0 : index
    %8 = vector.load %arg2[%c0_4, %c0_5, %c0_6] : memref<4x32x1xf32, #tpu.memory_space<vmem>>, vector<1x32x1xf32>
    %9 = vector.shape_cast %8 : vector<1x32x1xf32> to vector<32x1xf32>
    %cst = arith.constant dense<0.000000e+00> : vector<32x128xf32>
    %10 = tpu.matmul %7, %5, %cst {dimension_numbers = #tpu.dot_dimension_numbers<[1], [1], [0], [0], [0, 0, 1, 0], [], []>} : vector<32x8xf32>, vector<128x8xf32>, vector<32x128xf32> -> vector<32x128xf32>
    %11 = vector.broadcast %9 : vector<32x1xf32> to vector<32x128xf32>
    %12 = arith.addf %10, %11 : vector<32x128xf32>
    %cst_7 = arith.constant 0.00999999977 : f32
    %13 = vector.broadcast %cst_7 : f32 to vector<32x128xf32>
    %14 = arith.mulf %13, %12 : vector<32x128xf32>
    %15 = arith.maximumf %12, %14 : vector<32x128xf32>
    %16 = arith.mulf %15, %4 : vector<32x128xf32>
    %cst_8 = arith.constant dense<0.000000e+00> : vector<32xf32>
    %17 = vector.multi_reduction <add>, %16, %cst_8 [1] : vector<32x128xf32> to vector<32xf32>
    %18 = vector.shape_cast %17 : vector<32xf32> to vector<32x1xf32>
    %cst_9 = arith.constant 1.250000e-01 : f32
    %19 = vector.broadcast %cst_9 : f32 to vector<32x1xf32>
    %20 = arith.mulf %18, %19 : vector<32x1xf32>
    %21 = vector.broadcast %20 : vector<32x1xf32> to vector<32x128xf32>
    %22 = arith.subf %15, %21 : vector<32x128xf32>
    %23 = arith.mulf %22, %4 : vector<32x128xf32>
    %24 = arith.mulf %23, %23 : vector<32x128xf32>
    %cst_10 = arith.constant dense<0.000000e+00> : vector<32xf32>
    %25 = vector.multi_reduction <add>, %24, %cst_10 [1] : vector<32x128xf32> to vector<32xf32>
    %26 = vector.shape_cast %25 : vector<32xf32> to vector<32x1xf32>
    %cst_11 = arith.constant 1.250000e-01 : f32
    %27 = vector.broadcast %cst_11 : f32 to vector<32x1xf32>
    %28 = arith.mulf %26, %27 : vector<32x1xf32>
    %cst_12 = arith.constant 9.99999974E-6 : f32
    %29 = vector.broadcast %cst_12 : f32 to vector<32x1xf32>
    %30 = arith.addf %28, %29 : vector<32x1xf32>
    %31 = math.rsqrt %30 : vector<32x1xf32>
    %32 = vector.broadcast %31 : vector<32x1xf32> to vector<32x128xf32>
    %33 = arith.mulf %22, %32 : vector<32x128xf32>
    %c1 = arith.constant 1 : index
    %c0_13 = arith.constant 0 : index
    %c0_14 = arith.constant 0 : index
    %34 = vector.load %arg1[%c1, %c0_13, %c0_14] : memref<4x32x32xf32, #tpu.memory_space<vmem>>, vector<1x32x32xf32>
    %35 = vector.shape_cast %34 : vector<1x32x32xf32> to vector<32x32xf32>
    %c1_15 = arith.constant 1 : index
    %c0_16 = arith.constant 0 : index
    %c0_17 = arith.constant 0 : index
    %36 = vector.load %arg2[%c1_15, %c0_16, %c0_17] : memref<4x32x1xf32, #tpu.memory_space<vmem>>, vector<1x32x1xf32>
    %37 = vector.shape_cast %36 : vector<1x32x1xf32> to vector<32x1xf32>
    %cst_18 = arith.constant dense<0.000000e+00> : vector<32x128xf32>
    %38 = tpu.matmul %35, %33, %cst_18 {dimension_numbers = #tpu.dot_dimension_numbers<[1], [0], [0], [1], [0, 0, 1, 1], [], []>} : vector<32x32xf32>, vector<32x128xf32>, vector<32x128xf32> -> vector<32x128xf32>
    %39 = vector.broadcast %37 : vector<32x1xf32> to vector<32x128xf32>
    %40 = arith.addf %38, %39 : vector<32x128xf32>
    %cst_19 = arith.constant 0.00999999977 : f32
    %41 = vector.broadcast %cst_19 : f32 to vector<32x128xf32>
    %42 = arith.mulf %41, %40 : vector<32x128xf32>
    %43 = arith.maximumf %40, %42 : vector<32x128xf32>
    %44 = arith.mulf %43, %4 : vector<32x128xf32>
    %cst_20 = arith.constant dense<0.000000e+00> : vector<32xf32>
    %45 = vector.multi_reduction <add>, %44, %cst_20 [1] : vector<32x128xf32> to vector<32xf32>
    %46 = vector.shape_cast %45 : vector<32xf32> to vector<32x1xf32>
    %cst_21 = arith.constant 1.250000e-01 : f32
    %47 = vector.broadcast %cst_21 : f32 to vector<32x1xf32>
    %48 = arith.mulf %46, %47 : vector<32x1xf32>
    %49 = vector.broadcast %48 : vector<32x1xf32> to vector<32x128xf32>
    %50 = arith.subf %43, %49 : vector<32x128xf32>
    %51 = arith.mulf %50, %4 : vector<32x128xf32>
    %52 = arith.mulf %51, %51 : vector<32x128xf32>
    %cst_22 = arith.constant dense<0.000000e+00> : vector<32xf32>
    %53 = vector.multi_reduction <add>, %52, %cst_22 [1] : vector<32x128xf32> to vector<32xf32>
    %54 = vector.shape_cast %53 : vector<32xf32> to vector<32x1xf32>
    %cst_23 = arith.constant 1.250000e-01 : f32
    %55 = vector.broadcast %cst_23 : f32 to vector<32x1xf32>
    %56 = arith.mulf %54, %55 : vector<32x1xf32>
    %cst_24 = arith.constant 9.99999974E-6 : f32
    %57 = vector.broadcast %cst_24 : f32 to vector<32x1xf32>
    %58 = arith.addf %56, %57 : vector<32x1xf32>
    %59 = math.rsqrt %58 : vector<32x1xf32>
    %60 = vector.broadcast %59 : vector<32x1xf32> to vector<32x128xf32>
    %61 = arith.mulf %50, %60 : vector<32x128xf32>
    %c2 = arith.constant 2 : index
    %c0_25 = arith.constant 0 : index
    %c0_26 = arith.constant 0 : index
    %62 = vector.load %arg1[%c2, %c0_25, %c0_26] : memref<4x32x32xf32, #tpu.memory_space<vmem>>, vector<1x32x32xf32>
    %63 = vector.shape_cast %62 : vector<1x32x32xf32> to vector<32x32xf32>
    %c2_27 = arith.constant 2 : index
    %c0_28 = arith.constant 0 : index
    %c0_29 = arith.constant 0 : index
    %64 = vector.load %arg2[%c2_27, %c0_28, %c0_29] : memref<4x32x1xf32, #tpu.memory_space<vmem>>, vector<1x32x1xf32>
    %65 = vector.shape_cast %64 : vector<1x32x1xf32> to vector<32x1xf32>
    %cst_30 = arith.constant dense<0.000000e+00> : vector<32x128xf32>
    %66 = tpu.matmul %63, %61, %cst_30 {dimension_numbers = #tpu.dot_dimension_numbers<[1], [0], [0], [1], [0, 0, 1, 1], [], []>} : vector<32x32xf32>, vector<32x128xf32>, vector<32x128xf32> -> vector<32x128xf32>
    %67 = vector.broadcast %65 : vector<32x1xf32> to vector<32x128xf32>
    %68 = arith.addf %66, %67 : vector<32x128xf32>
    %cst_31 = arith.constant 0.00999999977 : f32
    %69 = vector.broadcast %cst_31 : f32 to vector<32x128xf32>
    %70 = arith.mulf %69, %68 : vector<32x128xf32>
    %71 = arith.maximumf %68, %70 : vector<32x128xf32>
    %72 = arith.mulf %71, %4 : vector<32x128xf32>
    %cst_32 = arith.constant dense<0.000000e+00> : vector<32xf32>
    %73 = vector.multi_reduction <add>, %72, %cst_32 [1] : vector<32x128xf32> to vector<32xf32>
    %74 = vector.shape_cast %73 : vector<32xf32> to vector<32x1xf32>
    %cst_33 = arith.constant 1.250000e-01 : f32
    %75 = vector.broadcast %cst_33 : f32 to vector<32x1xf32>
    %76 = arith.mulf %74, %75 : vector<32x1xf32>
    %77 = vector.broadcast %76 : vector<32x1xf32> to vector<32x128xf32>
    %78 = arith.subf %71, %77 : vector<32x128xf32>
    %79 = arith.mulf %78, %4 : vector<32x128xf32>
    %80 = arith.mulf %79, %79 : vector<32x128xf32>
    %cst_34 = arith.constant dense<0.000000e+00> : vector<32xf32>
    %81 = vector.multi_reduction <add>, %80, %cst_34 [1] : vector<32x128xf32> to vector<32xf32>
    %82 = vector.shape_cast %81 : vector<32xf32> to vector<32x1xf32>
    %cst_35 = arith.constant 1.250000e-01 : f32
    %83 = vector.broadcast %cst_35 : f32 to vector<32x1xf32>
    %84 = arith.mulf %82, %83 : vector<32x1xf32>
    %cst_36 = arith.constant 9.99999974E-6 : f32
    %85 = vector.broadcast %cst_36 : f32 to vector<32x1xf32>
    %86 = arith.addf %84, %85 : vector<32x1xf32>
    %87 = math.rsqrt %86 : vector<32x1xf32>
    %88 = vector.broadcast %87 : vector<32x1xf32> to vector<32x128xf32>
    %89 = arith.mulf %78, %88 : vector<32x128xf32>
    %c3 = arith.constant 3 : index
    %c0_37 = arith.constant 0 : index
    %c0_38 = arith.constant 0 : index
    %90 = vector.load %arg1[%c3, %c0_37, %c0_38] : memref<4x32x32xf32, #tpu.memory_space<vmem>>, vector<1x16x32xf32>
    %91 = vector.shape_cast %90 : vector<1x16x32xf32> to vector<16x32xf32>
    %c3_39 = arith.constant 3 : index
    %c0_40 = arith.constant 0 : index
    %c0_41 = arith.constant 0 : index
    %92 = vector.load %arg2[%c3_39, %c0_40, %c0_41] : memref<4x32x1xf32, #tpu.memory_space<vmem>>, vector<1x16x1xf32>
    %93 = vector.shape_cast %92 : vector<1x16x1xf32> to vector<16x1xf32>
    %cst_42 = arith.constant dense<0.000000e+00> : vector<16x128xf32>
    %94 = tpu.matmul %91, %89, %cst_42 {dimension_numbers = #tpu.dot_dimension_numbers<[1], [0], [0], [1], [0, 0, 1, 1], [], []>} : vector<16x32xf32>, vector<32x128xf32>, vector<16x128xf32> -> vector<16x128xf32>
    %95 = vector.broadcast %93 : vector<16x1xf32> to vector<16x128xf32>
    %96 = arith.addf %94, %95 : vector<16x128xf32>
    %c0_43 = arith.constant 0 : index
    %c0_44 = arith.constant 0 : index
    %97 = vector.load %arg3[%c0_43, %c0_44] : memref<16x128xf32, #tpu.memory_space<vmem>>, vector<16x128xf32>
    tpu.vector_store %arg3[%c0_43, %c0_44], %96 {strides = array<i32>} : memref<16x128xf32, #tpu.memory_space<vmem>>, vector<16x128xf32>,
    return
  }
}

</mosaic_0001>

<llo_original>
// kernel: tpu_custom_call.1
$region0: #{tpu_custom_call.1}
  #allocation0 [shape = 'u32[]', space=smem, size = 0x4, offset = 0x4, fixed_abs, tag = 'smem constant byte address 0x4 - core index']
  #allocation1 [shape = 'u32[144,128]{1,0:T(1,128)}', space=vmem, size = 0x12000, scoped, tag = 'internal scratch']
  %s0 = inlined_call_operand.vmem [shape: f32[128,8], index: 0, kind: input, shape index: {}]
  %s1 = inlined_call_operand.vmem [shape: f32[4,32,32], index: 1, kind: input, shape index: {}]
  %s2 = inlined_call_operand.vmem [shape: f32[4,32,1], index: 2, kind: input, shape index: {}]
  %s3 = inlined_call_operand.hbm [shape: f32[16,128], index: 3, kind: output, shape index: {}]
  %s4 = sld [smem:[#allocation0]]
  $region22: #{tpu_custom_call.1} parent=0
    _
  %s6 = ssub.s32 1, %s4
  %s7 = scalar_select 0, %s6, %s4
  $region1: #{tpu_custom_call.1} parent=0
    #allocation2 [shape = 'u8[8192]{0}', space=vmem, size = 0x2000, scoped, tag = 'output window, operand 0, single buffered']
    #allocation3 [shape = 's32[1]{0}', space=sflag, size = 0x4, scoped, tag = 'scoped memory for tpu_custom_call.1']
    %8 = vsyncpa [#allocation3], 0
    // Predicated region
    $region2: #{tpu_custom_call.1} parent=1 // pred_check
      _
    $region3: #{tpu_custom_call.1} parent=1 // pred_check_branch
      %10 = sbr.rel (0) target = $region5
    $region4: #{tpu_custom_call.1} parent=1 // pred_region
      _
    $region5: #{tpu_custom_call.1} parent=1 // pred_fallthru
      _
    // Predicated region
    $region6: #{tpu_custom_call.1} parent=1 // pred_check
      _
    $region7: #{tpu_custom_call.1} parent=1 // pred_check_branch
      %12 = sbr.rel (0) target = $region9
    $region8: #{tpu_custom_call.1} parent=1 // pred_region
      _
    $region9: #{tpu_custom_call.1} parent=1 // pred_fallthru
      _
    // Predicated region
    $region10: #{tpu_custom_call.1} parent=1 // pred_check
      _
    $region11: #{tpu_custom_call.1} parent=1 // pred_check_branch
      %14 = sbr.rel (0) target = $region13
    $region12: #{tpu_custom_call.1} parent=1 // pred_region
      _
    $region13: #{tpu_custom_call.1} parent=1 // pred_fallthru
      _
    %v15 = vlaneseq
    %v16 = vand.u32 %v15, 127
    %vm17 = vcmp.lt.s32.totalorder %v16, 8
    %v18 = vsel %vm17, 1, 0
    %v19 = vcvt.s32.f32 %v18
    %v20 = vld [vmem:[%s0] sm:$0xff]
    %v21 = vld [vmem:[%s0 + $0x8] sm:$0xff]
    %v22 = vld [vmem:[%s0 + $0x10] sm:$0xff]
    %v23 = vld [vmem:[%s0 + $0x18] sm:$0xff]
    %v24 = vld [vmem:[%s0 + $0x20] sm:$0xff]
    %v25 = vld [vmem:[%s0 + $0x28] sm:$0xff]
    %v26 = vld [vmem:[%s0 + $0x30] sm:$0xff]
    %v27 = vld [vmem:[%s0 + $0x38] sm:$0xff]
    %v28 = vld [vmem:[%s0 + $0x40] sm:$0xff]
    %v29 = vld [vmem:[%s0 + $0x48] sm:$0xff]
    %v30 = vld [vmem:[%s0 + $0x50] sm:$0xff]
    %v31 = vld [vmem:[%s0 + $0x58] sm:$0xff]
    %v32 = vld [vmem:[%s0 + $0x60] sm:$0xff]
    %v33 = vld [vmem:[%s0 + $0x68] sm:$0xff]
    %v34 = vld [vmem:[%s0 + $0x70] sm:$0xff]
    %v35 = vld [vmem:[%s0 + $0x78] sm:$0xff]
    %v36 = vld [vmem:[%s1] sm:$0xff]
    %v37 = vld [vmem:[%s1 + $0x8] sm:$0xff]
    %v38 = vld [vmem:[%s1 + $0x10] sm:$0xff]
    %v39 = vld [vmem:[%s1 + $0x18] sm:$0xff]
    %v40 = vld [vmem:[%s2] sm:$0xff]
    %v41 = vld [vmem:[%s2 + $0x8] sm:$0xff]
    %v42 = vld [vmem:[%s2 + $0x10] sm:$0xff]
    %v43 = vld [vmem:[%s2 + $0x18] sm:$0xff]
    %45 = vset.pattern.permute.xlu0 0
    %46 = vperm.xlu0 %45, %v40
    %v47 = vpop.permute.xlu0 %46
    %50 = vset.pattern.permute.xlu0 0
    %51 = vperm.xlu0 %50, %v41
    %v52 = vpop.permute.xlu0 %51
    %55 = vset.pattern.permute.xlu0 0
    %56 = vperm.xlu0 %55, %v42
    %v57 = vpop.permute.xlu0 %56
    %60 = vset.pattern.permute.xlu0 0
    %61 = vperm.xlu0 %60, %v43
    %v62 = vpop.permute.xlu0 %61
    %vm64 = vcmask 64512
    %v66 = vsel %vm64, %v36, 0
    %v69 = vsel %vm64, %v37, 0
    %v72 = vsel %vm64, %v38, 0
    %v75 = vsel %vm64, %v39, 0
    %v78 = vsel %vm64, %v20, 0
    %v81 = vsel %vm64, %v21, 0
    %v84 = vsel %vm64, %v22, 0
    %v87 = vsel %vm64, %v23, 0
    %v90 = vsel %vm64, %v24, 0
    %v93 = vsel %vm64, %v25, 0
    %v96 = vsel %vm64, %v26, 0
    %v99 = vsel %vm64, %v27, 0
    %v102 = vsel %vm64, %v28, 0
    %v105 = vsel %vm64, %v29, 0
    %v108 = vsel %vm64, %v30, 0
    %v111 = vsel %vm64, %v31, 0
    %v114 = vsel %vm64, %v32, 0
    %v117 = vsel %vm64, %v33, 0
    %v120 = vsel %vm64, %v34, 0
    %v123 = vsel %vm64, %v35, 0
    %125 = vmatprep.subr.mxu0 0.0
    %126 = vmatpush1.xpose.msra.mxu0 %v78
    %127 = vmatprep.subr.mxu0 0.0
    %128 = vmatpush1.xpose.msra.mxu0 %v81
    %129 = vmatprep.subr.mxu0 0.0
    %130 = vmatpush1.xpose.msra.mxu0 %v84
    %131 = vmatprep.subr.mxu0 0.0
    %132 = vmatpush1.xpose.msra.mxu0 %v87
    %133 = vmatprep.subr.mxu0 0.0
    %134 = vmatpush1.xpose.msra.mxu0 %v90
    %135 = vmatprep.subr.mxu0 0.0
    %136 = vmatpush1.xpose.msra.mxu0 %v93
    %137 = vmatprep.subr.mxu0 0.0
    %138 = vmatpush1.xpose.msra.mxu0 %v96
    %139 = vmatprep.subr.mxu0 0.0
    %140 = vmatpush1.xpose.msra.mxu0 %v99
    %141 = vmatprep.subr.mxu0 0.0
    %142 = vmatpush1.xpose.msra.mxu0 %v102
    %143 = vmatprep.subr.mxu0 0.0
    %144 = vmatpush1.xpose.msra.mxu0 %v105
    %145 = vmatprep.subr.mxu0 0.0
    %146 = vmatpush1.xpose.msra.mxu0 %v108
    %147 = vmatprep.subr.mxu0 0.0
    %148 = vmatpush1.xpose.msra.mxu0 %v111
    %149 = vmatprep.subr.mxu0 0.0
    %150 = vmatpush1.xpose.msra.mxu0 %v114
    %151 = vmatprep.subr.mxu0 0.0
    %152 = vmatpush1.xpose.msra.mxu0 %v117
    %153 = vmatprep.subr.mxu0 0.0
    %154 = vmatpush1.xpose.msra.mxu0 %v120
    %155 = vmatprep.subr.mxu0 0.0
    %156 = vmatpush1.xpose.msra.mxu0 %v123
    %157 = vmatprep.subr.mxu0 0.0
    %158 = vmatpush1.xpose.msra.mxu0 0.0
    %159 = vmatprep.subr.mxu0 0.0
    %160 = vmatpush1.xpose.msra.mxu0 0.0
    %161 = vmatprep.subr.mxu0 0.0
    %162 = vmatpush1.xpose.msra.mxu0 0.0
    %163 = vmatprep.subr.mxu0 0.0
    %164 = vmatpush1.xpose.msra.mxu0 0.0
    %165 = vmatprep.subr.mxu0 0.0
    %166 = vmatpush1.xpose.msra.mxu0 0.0
    %167 = vmatprep.subr.mxu0 0.0
    %168 = vmatpush1.xpose.msra.mxu0 0.0
    %169 = vmatprep.subr.mxu0 0.0
    %170 = vmatpush1.xpose.msra.mxu0 0.0
    %171 = vmatprep.subr.mxu0 0.0
    %172 = vmatpush1.xpose.msra.mxu0 0.0
    %173 = vmatprep.subr.mxu0 0.0
    %174 = vmatpush1.xpose.msra.mxu0 0.0
    %175 = vmatprep.subr.mxu0 0.0
    %176 = vmatpush1.xpose.msra.mxu0 0.0
    %177 = vmatprep.subr.mxu0 0.0
    %178 = vmatpush1.xpose.msra.mxu0 0.0
    %179 = vmatprep.subr.mxu0 0.0
    %180 = vmatpush1.xpose.msra.mxu0 0.0
    %181 = vmatprep.subr.mxu0 0.0
    %182 = vmatpush1.xpose.msra.mxu0 0.0
    %183 = vmatprep.subr.mxu0 0.0
    %184 = vmatpush1.xpose.msra.mxu0 0.0
    %185 = vmatprep.subr.mxu0 0.0
    %186 = vmatpush1.xpose.msra.mxu0 0.0
    %187 = vmatprep.subr.mxu0 0.0
    %188 = vmatpush1.xpose.msra.mxu0 0.0
    %189 = vmatprep.mubr.f32.mxu0 0.0
    %190 = vmatmul.mubr.f32.gmra.mrb[0].mxu0 %v66
    %v191 = vpop.f32.mrb[0].mxu0
    %v192 = vadd.f32 %v47, %v191
    %v193 = vpop.f32.mrb[0].mxu0
    %194 = vmatprep.mubr.f32.mxu0 0.0
    %195 = vmatmul.mubr.f32.gmra.mrb[0].mxu0 %v69
    %v196 = vpop.f32.mrb[0].mxu0
    %v197 = vadd.f32 %v52, %v196
    %v198 = vpop.f32.mrb[0].mxu0
    %199 = vmatprep.mubr.f32.mxu0 0.0
    %200 = vmatmul.mubr.f32.gmra.mrb[0].mxu0 %v72
    %v201 = vpop.f32.mrb[0].mxu0
    %v202 = vadd.f32 %v57, %v201
    %v203 = vpop.f32.mrb[0].mxu0
    %204 = vmatprep.mubr.f32.mxu0 0.0
    %205 = vmatmul.mubr.f32.gmra.mrb[0].mxu0 %v75
    %v206 = vpop.f32.mrb[0].mxu0
    %v207 = vadd.f32 %v62, %v206
    %v208 = vpop.f32.mrb[0].mxu0
    %209 = vdwg.mxu0
    %v210 = vmul.f32 %v192, 0.01
    %v211 = vmul.f32 %v197, 0.01
    %v212 = vmul.f32 %v202, 0.01
    %v213 = vmul.f32 %v207, 0.01
    %v214 = vmax.f32 %v192, %v210
    %v215 = vmax.f32 %v197, %v211
    %v216 = vmax.f32 %v202, %v212
    %v217 = vmax.f32 %v207, %v213
    %v218 = vmul.f32 %v214, %v19
    %v219 = vmul.f32 %v215, %v19
    %v220 = vmul.f32 %v216, %v19
    %v221 = vmul.f32 %v217, %v19
    %222 = vadd.xlane.f32.xlu0 %v218
    %v223 = vpop.xlane.xlu0 %222
    %224 = vadd.xlane.f32.xlu0 %v219
    %v225 = vpop.xlane.xlu0 %224
    %226 = vadd.xlane.f32.xlu0 %v220
    %v227 = vpop.xlane.xlu0 %226
    %228 = vadd.xlane.f32.xlu0 %v221
    %v229 = vpop.xlane.xlu0 %228
    %v230 = vmul.f32 %v223, 0.125
    %v231 = vmul.f32 %v225, 0.125
    %v232 = vmul.f32 %v227, 0.125
    %v233 = vmul.f32 %v229, 0.125
    %v234 = vsub.f32 %v214, %v230
    %v235 = vsub.f32 %v215, %v231
    %v236 = vsub.f32 %v216, %v232
    %v237 = vsub.f32 %v217, %v233
    %v238 = vmul.f32 %v234, %v19
    %v239 = vmul.f32 %v235, %v19
    %v240 = vmul.f32 %v236, %v19
    %v241 = vmul.f32 %v237, %v19
    %v242 = vmul.f32 %v238, %v238
    %v243 = vmul.f32 %v239, %v239
    %v244 = vmul.f32 %v240, %v240
    %v245 = vmul.f32 %v241, %v241
    %246 = vadd.xlane.f32.xlu0 %v242
    %v247 = vpop.xlane.xlu0 %246
    %248 = vadd.xlane.f32.xlu0 %v243
    %v249 = vpop.xlane.xlu0 %248
    %250 = vadd.xlane.f32.xlu0 %v244
    %v251 = vpop.xlane.xlu0 %250
    %252 = vadd.xlane.f32.xlu0 %v245
    %v253 = vpop.xlane.xlu0 %252
    %v254 = vmul.f32 %v247, 0.125
    %v255 = vmul.f32 %v249, 0.125
    %v256 = vmul.f32 %v251, 0.125
    %v257 = vmul.f32 %v253, 0.125
    %v258 = vadd.f32 %v254, 1e-05
    %v259 = vadd.f32 %v255, 1e-05
    %v260 = vadd.f32 %v256, 1e-05
    %v261 = vadd.f32 %v257, 1e-05
    %v262 = vrsqrt.pop %v258
    %v263 = vrsqrt.pop %v259
    %v264 = vrsqrt.pop %v260
    %v265 = vrsqrt.pop %v261
    %v266 = vmul.f32 %v234, %v262
    %v267 = vmul.f32 %v235, %v263
    %v268 = vmul.f32 %v236, %v264
    %v269 = vmul.f32 %v237, %v265
    %s270 = scalar_lea.vmem %s1, 32
    %v271 = vld [vmem:[%s270] sm:$0xff]
    %v272 = vld [vmem:[%s270 + $0x8] sm:$0xff]
    %v273 = vld [vmem:[%s270 + $0x10] sm:$0xff]
    %v274 = vld [vmem:[%s270 + $0x18] sm:$0xff]
    %s275 = scalar_lea.vmem %s2, 32
    %v276 = vld [vmem:[%s275] sm:$0xff]
    %v277 = vld [vmem:[%s275 + $0x8] sm:$0xff]
    %v278 = vld [vmem:[%s275 + $0x10] sm:$0xff]
    %v279 = vld [vmem:[%s275 + $0x18] sm:$0xff]
    %281 = vset.pattern.permute.xlu0 0
    %282 = vperm.xlu0 %281, %v276
    %v283 = vpop.permute.xlu0 %282
    %286 = vset.pattern.permute.xlu0 0
    %287 = vperm.xlu0 %286, %v277
    %v288 = vpop.permute.xlu0 %287
    %291 = vset.pattern.permute.xlu0 0
    %292 = vperm.xlu0 %291, %v278
    %v293 = vpop.permute.xlu0 %292
    %296 = vset.pattern.permute.xlu0 0
    %297 = vperm.xlu0 %296, %v279
    %v298 = vpop.permute.xlu0 %297
    %vm300 = vcmask 261120
    %v302 = vsel %vm300, %v271, 0
    %v305 = vsel %vm300, %v272, 0
    %v308 = vsel %vm300, %v273, 0
    %v311 = vsel %vm300, %v274, 0
    %313 = vmatprep.subr.mxu0 0.0
    %314 = vmatpush1.msra.mxu0 %v266
    %315 = vmatprep.subr.mxu0 0.0
    %316 = vmatpush1.msra.mxu0 %v267
    %317 = vmatprep.subr.mxu0 0.0
    %318 = vmatpush1.msra.mxu0 %v268
    %319 = vmatprep.subr.mxu0 0.0
    %320 = vmatpush1.msra.mxu0 %v269
    %321 = vmatprep.subr.mxu0 0.0
    %322 = vmatpush1.msra.mxu0 0.0
    %323 = vmatprep.subr.mxu0 0.0
    %324 = vmatpush1.msra.mxu0 0.0
    %325 = vmatprep.subr.mxu0 0.0
    %326 = vmatpush1.msra.mxu0 0.0
    %327 = vmatprep.subr.mxu0 0.0
    %328 = vmatpush1.msra.mxu0 0.0
    %329 = vmatprep.subr.mxu0 0.0
    %330 = vmatpush1.msra.mxu0 0.0
    %331 = vmatprep.subr.mxu0 0.0
    %332 = vmatpush1.msra.mxu0 0.0
    %333 = vmatprep.subr.mxu0 0.0
    %334 = vmatpush1.msra.mxu0 0.0
    %335 = vmatprep.subr.mxu0 0.0
    %336 = vmatpush1.msra.mxu0 0.0
    %337 = vmatprep.subr.mxu0 0.0
    %338 = vmatpush1.msra.mxu0 0.0
    %339 = vmatprep.subr.mxu0 0.0
    %340 = vmatpush1.msra.mxu0 0.0
    %341 = vmatprep.subr.mxu0 0.0
    %342 = vmatpush1.msra.mxu0 0.0
    %343 = vmatprep.subr.mxu0 0.0
    %344 = vmatpush1.msra.mxu0 0.0
    %345 = vmatprep.subr.mxu0 0.0
    %346 = vmatpush1.msra.mxu0 0.0
    %347 = vmatprep.subr.mxu0 0.0
    %348 = vmatpush1.msra.mxu0 0.0
    %349 = vmatprep.subr.mxu0 0.0
    %350 = vmatpush1.msra.mxu0 0.0
    %351 = vmatprep.subr.mxu0 0.0
    %352 = vmatpush1.msra.mxu0 0.0
    %353 = vmatprep.subr.mxu0 0.0
    %354 = vmatpush1.msra.mxu0 0.0
    %355 = vmatprep.subr.mxu0 0.0
    %356 = vmatpush1.msra.mxu0 0.0
    %357 = vmatprep.subr.mxu0 0.0
    %358 = vmatpush1.msra.mxu0 0.0
    %359 = vmatprep.subr.mxu0 0.0
    %360 = vmatpush1.msra.mxu0 0.0
    %361 = vmatprep.subr.mxu0 0.0
    %362 = vmatpush1.msra.mxu0 0.0
    %363 = vmatprep.subr.mxu0 0.0
    %364 = vmatpush1.msra.mxu0 0.0
    %365 = vmatprep.subr.mxu0 0.0
    %366 = vmatpush1.msra.mxu0 0.0
    %367 = vmatprep.subr.mxu0 0.0
    %368 = vmatpush1.msra.mxu0 0.0
    %369 = vmatprep.subr.mxu0 0.0
    %370 = vmatpush1.msra.mxu0 0.0
    %371 = vmatprep.subr.mxu0 0.0
    %372 = vmatpush1.msra.mxu0 0.0
    %373 = vmatprep.subr.mxu0 0.0
    %374 = vmatpush1.msra.mxu0 0.0
    %375 = vmatprep.subr.mxu0 0.0
    %376 = vmatpush1.msra.mxu0 0.0
    %377 = vmatprep.mubr.f32.mxu0 0.0
    %378 = vmatmul.mubr.f32.gmra.mrb[0].mxu0 %v302
    %v379 = vpop.f32.mrb[0].mxu0
    %v380 = vadd.f32 %v283, %v379
    %v381 = vpop.f32.mrb[0].mxu0
    %382 = vmatprep.mubr.f32.mxu0 0.0
    %383 = vmatmul.mubr.f32.gmra.mrb[0].mxu0 %v305
    %v384 = vpop.f32.mrb[0].mxu0
    %v385 = vadd.f32 %v288, %v384
    %v386 = vpop.f32.mrb[0].mxu0
    %387 = vmatprep.mubr.f32.mxu0 0.0
    %388 = vmatmul.mubr.f32.gmra.mrb[0].mxu0 %v308
    %v389 = vpop.f32.mrb[0].mxu0
    %v390 = vadd.f32 %v293, %v389
    %v391 = vpop.f32.mrb[0].mxu0
    %392 = vmatprep.mubr.f32.mxu0 0.0
    %393 = vmatmul.mubr.f32.gmra.mrb[0].mxu0 %v311
    %v394 = vpop.f32.mrb[0].mxu0
    %v395 = vadd.f32 %v298, %v394
    %v396 = vpop.f32.mrb[0].mxu0
    %397 = vdwg.mxu0
    %v398 = vmul.f32 %v380, 0.01
    %v399 = vmul.f32 %v385, 0.01
    %v400 = vmul.f32 %v390, 0.01
    %v401 = vmul.f32 %v395, 0.01
    %v402 = vmax.f32 %v380, %v398
    %v403 = vmax.f32 %v385, %v399
    %v404 = vmax.f32 %v390, %v400
    %v405 = vmax.f32 %v395, %v401
    %v406 = vmul.f32 %v402, %v19
    %v407 = vmul.f32 %v403, %v19
    %v408 = vmul.f32 %v404, %v19
    %v409 = vmul.f32 %v405, %v19
    %410 = vadd.xlane.f32.xlu0 %v406
    %v411 = vpop.xlane.xlu0 %410
    %412 = vadd.xlane.f32.xlu0 %v407
    %v413 = vpop.xlane.xlu0 %412
    %414 = vadd.xlane.f32.xlu0 %v408
    %v415 = vpop.xlane.xlu0 %414
    %416 = vadd.xlane.f32.xlu0 %v409
    %v417 = vpop.xlane.xlu0 %416
    %v418 = vmul.f32 %v411, 0.125
    %v419 = vmul.f32 %v413, 0.125
    %v420 = vmul.f32 %v415, 0.125
    %v421 = vmul.f32 %v417, 0.125
    %v422 = vsub.f32 %v402, %v418
    %v423 = vsub.f32 %v403, %v419
    %v424 = vsub.f32 %v404, %v420
    %v425 = vsub.f32 %v405, %v421
    %v426 = vmul.f32 %v422, %v19
    %v427 = vmul.f32 %v423, %v19
    %v428 = vmul.f32 %v424, %v19
    %v429 = vmul.f32 %v425, %v19
    %v430 = vmul.f32 %v426, %v426
    %v431 = vmul.f32 %v427, %v427
    %v432 = vmul.f32 %v428, %v428
    %v433 = vmul.f32 %v429, %v429
    %434 = vadd.xlane.f32.xlu0 %v430
    %v435 = vpop.xlane.xlu0 %434
    %436 = vadd.xlane.f32.xlu0 %v431
    %v437 = vpop.xlane.xlu0 %436
    %438 = vadd.xlane.f32.xlu0 %v432
    %v439 = vpop.xlane.xlu0 %438
    %440 = vadd.xlane.f32.xlu0 %v433
    %v441 = vpop.xlane.xlu0 %440
    %v442 = vmul.f32 %v435, 0.125
    %v443 = vmul.f32 %v437, 0.125
    %v444 = vmul.f32 %v439, 0.125
    %v445 = vmul.f32 %v441, 0.125
    %v446 = vadd.f32 %v442, 1e-05
    %v447 = vadd.f32 %v443, 1e-05
    %v448 = vadd.f32 %v444, 1e-05
    %v449 = vadd.f32 %v445, 1e-05
    %v450 = vrsqrt.pop %v446
    %v451 = vrsqrt.pop %v447
    %v452 = vrsqrt.pop %v448
    %v453 = vrsqrt.pop %v449
    %v454 = vmul.f32 %v422, %v450
    %v455 = vmul.f32 %v423, %v451
    %v456 = vmul.f32 %v424, %v452
    %v457 = vmul.f32 %v425, %v453
    %s458 = scalar_lea.vmem %s1, 64
    %v459 = vld [vmem:[%s458] sm:$0xff]
    %v460 = vld [vmem:[%s458 + $0x8] sm:$0xff]
    %v461 = vld [vmem:[%s458 + $0x10] sm:$0xff]
    %v462 = vld [vmem:[%s458 + $0x18] sm:$0xff]
    %s463 = scalar_lea.vmem %s2, 64
    %v464 = vld [vmem:[%s463] sm:$0xff]
    %v465 = vld [vmem:[%s463 + $0x8] sm:$0xff]
    %v466 = vld [vmem:[%s463 + $0x10] sm:$0xff]
    %v467 = vld [vmem:[%s463 + $0x18] sm:$0xff]
    %469 = vset.pattern.permute.xlu0 0
    %470 = vperm.xlu0 %469, %v464
    %v471 = vpop.permute.xlu0 %470
    %474 = vset.pattern.permute.xlu0 0
    %475 = vperm.xlu0 %474, %v465
    %v476 = vpop.permute.xlu0 %475
    %479 = vset.pattern.permute.xlu0 0
    %480 = vperm.xlu0 %479, %v466
    %v481 = vpop.permute.xlu0 %480
    %484 = vset.pattern.permute.xlu0 0
    %485 = vperm.xlu0 %484, %v467
    %v486 = vpop.permute.xlu0 %485
    %v489 = vsel %vm300, %v459, 0
    %v492 = vsel %vm300, %v460, 0
    %v495 = vsel %vm300, %v461, 0
    %v498 = vsel %vm300, %v462, 0
    %500 = vmatprep.subr.mxu0 0.0
    %501 = vmatpush1.msra.mxu0 %v454
    %502 = vmatprep.subr.mxu0 0.0
    %503 = vmatpush1.msra.mxu0 %v455
    %504 = vmatprep.subr.mxu0 0.0
    %505 = vmatpush1.msra.mxu0 %v456
    %506 = vmatprep.subr.mxu0 0.0
    %507 = vmatpush1.msra.mxu0 %v457
    %508 = vmatprep.subr.mxu0 0.0
    %509 = vmatpush1.msra.mxu0 0.0
    %510 = vmatprep.subr.mxu0 0.0
    %511 = vmatpush1.msra.mxu0 0.0
    %512 = vmatprep.subr.mxu0 0.0
    %513 = vmatpush1.msra.mxu0 0.0
    %514 = vmatprep.subr.mxu0 0.0
    %515 = vmatpush1.msra.mxu0 0.0
    %516 = vmatprep.subr.mxu0 0.0
    %517 = vmatpush1.msra.mxu0 0.0
    %518 = vmatprep.subr.mxu0 0.0
    %519 = vmatpush1.msra.mxu0 0.0
    %520 = vmatprep.subr.mxu0 0.0
    %521 = vmatpush1.msra.mxu0 0.0
    %522 = vmatprep.subr.mxu0 0.0
    %523 = vmatpush1.msra.mxu0 0.0
    %524 = vmatprep.subr.mxu0 0.0
    %525 = vmatpush1.msra.mxu0 0.0
    %526 = vmatprep.subr.mxu0 0.0
    %527 = vmatpush1.msra.mxu0 0.0
    %528 = vmatprep.subr.mxu0 0.0
    %529 = vmatpush1.msra.mxu0 0.0
    %530 = vmatprep.subr.mxu0 0.0
    %531 = vmatpush1.msra.mxu0 0.0
    %532 = vmatprep.subr.mxu0 0.0
    %533 = vmatpush1.msra.mxu0 0.0
    %534 = vmatprep.subr.mxu0 0.0
    %535 = vmatpush1.msra.mxu0 0.0
    %536 = vmatprep.subr.mxu0 0.0
    %537 = vmatpush1.msra.mxu0 0.0
    %538 = vmatprep.subr.mxu0 0.0
    %539 = vmatpush1.msra.mxu0 0.0
    %540 = vmatprep.subr.mxu0 0.0
    %541 = vmatpush1.msra.mxu0 0.0
    %542 = vmatprep.subr.mxu0 0.0
    %543 = vmatpush1.msra.mxu0 0.0
    %544 = vmatprep.subr.mxu0 0.0
    %545 = vmatpush1.msra.mxu0 0.0
    %546 = vmatprep.subr.mxu0 0.0
    %547 = vmatpush1.msra.mxu0 0.0
    %548 = vmatprep.subr.mxu0 0.0
    %549 = vmatpush1.msra.mxu0 0.0
    %550 = vmatprep.subr.mxu0 0.0
    %551 = vmatpush1.msra.mxu0 0.0
    %552 = vmatprep.subr.mxu0 0.0
    %553 = vmatpush1.msra.mxu0 0.0
    %554 = vmatprep.subr.mxu0 0.0
    %555 = vmatpush1.msra.mxu0 0.0
    %556 = vmatprep.subr.mxu0 0.0
    %557 = vmatpush1.msra.mxu0 0.0
    %558 = vmatprep.subr.mxu0 0.0
    %559 = vmatpush1.msra.mxu0 0.0
    %560 = vmatprep.subr.mxu0 0.0
    %561 = vmatpush1.msra.mxu0 0.0
    %562 = vmatprep.subr.mxu0 0.0
    %563 = vmatpush1.msra.mxu0 0.0
    %564 = vmatprep.mubr.f32.mxu0 0.0
    %565 = vmatmul.mubr.f32.gmra.mrb[0].mxu0 %v489
    %v566 = vpop.f32.mrb[0].mxu0
    %v567 = vadd.f32 %v471, %v566
    %v568 = vpop.f32.mrb[0].mxu0
    %569 = vmatprep.mubr.f32.mxu0 0.0
    %570 = vmatmul.mubr.f32.gmra.mrb[0].mxu0 %v492
    %v571 = vpop.f32.mrb[0].mxu0
    %v572 = vadd.f32 %v476, %v571
    %v573 = vpop.f32.mrb[0].mxu0
    %574 = vmatprep.mubr.f32.mxu0 0.0
    %575 = vmatmul.mubr.f32.gmra.mrb[0].mxu0 %v495
    %v576 = vpop.f32.mrb[0].mxu0
    %v577 = vadd.f32 %v481, %v576
    %v578 = vpop.f32.mrb[0].mxu0
    %579 = vmatprep.mubr.f32.mxu0 0.0
    %580 = vmatmul.mubr.f32.gmra.mrb[0].mxu0 %v498
    %v581 = vpop.f32.mrb[0].mxu0
    %v582 = vadd.f32 %v486, %v581
    %v583 = vpop.f32.mrb[0].mxu0
    %584 = vdwg.mxu0
    %v585 = vmul.f32 %v567, 0.01
    %v586 = vmul.f32 %v572, 0.01
    %v587 = vmul.f32 %v577, 0.01
    %v588 = vmul.f32 %v582, 0.01
    %v589 = vmax.f32 %v567, %v585
    %v590 = vmax.f32 %v572, %v586
    %v591 = vmax.f32 %v577, %v587
    %v592 = vmax.f32 %v582, %v588
    %v593 = vmul.f32 %v589, %v19
    %v594 = vmul.f32 %v590, %v19
    %v595 = vmul.f32 %v591, %v19
    %v596 = vmul.f32 %v592, %v19
    %597 = vadd.xlane.f32.xlu0 %v593
    %v598 = vpop.xlane.xlu0 %597
    %599 = vadd.xlane.f32.xlu0 %v594
    %v600 = vpop.xlane.xlu0 %599
    %601 = vadd.xlane.f32.xlu0 %v595
    %v602 = vpop.xlane.xlu0 %601
    %603 = vadd.xlane.f32.xlu0 %v596
    %v604 = vpop.xlane.xlu0 %603
    %v605 = vmul.f32 %v598, 0.125
    %v606 = vmul.f32 %v600, 0.125
    %v607 = vmul.f32 %v602, 0.125
    %v608 = vmul.f32 %v604, 0.125
    %v609 = vsub.f32 %v589, %v605
    %v610 = vsub.f32 %v590, %v606
    %v611 = vsub.f32 %v591, %v607
    %v612 = vsub.f32 %v592, %v608
    %v613 = vmul.f32 %v609, %v19
    %v614 = vmul.f32 %v610, %v19
    %v615 = vmul.f32 %v611, %v19
    %v616 = vmul.f32 %v612, %v19
    %v617 = vmul.f32 %v613, %v613
    %v618 = vmul.f32 %v614, %v614
    %v619 = vmul.f32 %v615, %v615
    %v620 = vmul.f32 %v616, %v616
    %621 = vadd.xlane.f32.xlu0 %v617
    %v622 = vpop.xlane.xlu0 %621
    %623 = vadd.xlane.f32.xlu0 %v618
    %v624 = vpop.xlane.xlu0 %623
    %625 = vadd.xlane.f32.xlu0 %v619
    %v626 = vpop.xlane.xlu0 %625
    %627 = vadd.xlane.f32.xlu0 %v620
    %v628 = vpop.xlane.xlu0 %627
    %v629 = vmul.f32 %v622, 0.125
    %v630 = vmul.f32 %v624, 0.125
    %v631 = vmul.f32 %v626, 0.125
    %v632 = vmul.f32 %v628, 0.125
    %v633 = vadd.f32 %v629, 1e-05
    %v634 = vadd.f32 %v630, 1e-05
    %v635 = vadd.f32 %v631, 1e-05
    %v636 = vadd.f32 %v632, 1e-05
    %v637 = vrsqrt.pop %v633
    %v638 = vrsqrt.pop %v634
    %v639 = vrsqrt.pop %v635
    %v640 = vrsqrt.pop %v636
    %v641 = vmul.f32 %v609, %v637
    %v642 = vmul.f32 %v610, %v638
    %v643 = vmul.f32 %v611, %v639
    %v644 = vmul.f32 %v612, %v640
    %s645 = scalar_lea.vmem %s1, 96
    %v646 = vld [vmem:[%s645] sm:$0xff]
    %v647 = vld [vmem:[%s645 + $0x8] sm:$0xff]
    %s648 = scalar_lea.vmem %s2, 96
    %v649 = vld [vmem:[%s648] sm:$0xff]
    %v650 = vld [vmem:[%s648 + $0x8] sm:$0xff]
    %652 = vset.pattern.permute.xlu0 0
    %653 = vperm.xlu0 %652, %v649
    %v654 = vpop.permute.xlu0 %653
    %657 = vset.pattern.permute.xlu0 0
    %658 = vperm.xlu0 %657, %v650
    %v659 = vpop.permute.xlu0 %658
    %v662 = vsel %vm300, %v646, 0
    %v665 = vsel %vm300, %v647, 0
    %667 = vmatprep.subr.mxu0 0.0
    %668 = vmatpush1.msra.mxu0 %v641
    %669 = vmatprep.subr.mxu0 0.0
    %670 = vmatpush1.msra.mxu0 %v642
    %671 = vmatprep.subr.mxu0 0.0
    %672 = vmatpush1.msra.mxu0 %v643
    %673 = vmatprep.subr.mxu0 0.0
    %674 = vmatpush1.msra.mxu0 %v644
    %675 = vmatprep.subr.mxu0 0.0
    %676 = vmatpush1.msra.mxu0 0.0
    %677 = vmatprep.subr.mxu0 0.0
    %678 = vmatpush1.msra.mxu0 0.0
    %679 = vmatprep.subr.mxu0 0.0
    %680 = vmatpush1.msra.mxu0 0.0
    %681 = vmatprep.subr.mxu0 0.0
    %682 = vmatpush1.msra.mxu0 0.0
    %683 = vmatprep.subr.mxu0 0.0
    %684 = vmatpush1.msra.mxu0 0.0
    %685 = vmatprep.subr.mxu0 0.0
    %686 = vmatpush1.msra.mxu0 0.0
    %687 = vmatprep.subr.mxu0 0.0
    %688 = vmatpush1.msra.mxu0 0.0
    %689 = vmatprep.subr.mxu0 0.0
    %690 = vmatpush1.msra.mxu0 0.0
    %691 = vmatprep.subr.mxu0 0.0
    %692 = vmatpush1.msra.mxu0 0.0
    %693 = vmatprep.subr.mxu0 0.0
    %694 = vmatpush1.msra.mxu0 0.0
    %695 = vmatprep.subr.mxu0 0.0
    %696 = vmatpush1.msra.mxu0 0.0
    %697 = vmatprep.subr.mxu0 0.0
    %698 = vmatpush1.msra.mxu0 0.0
    %699 = vmatprep.subr.mxu0 0.0
    %700 = vmatpush1.msra.mxu0 0.0
    %701 = vmatprep.subr.mxu0 0.0
    %702 = vmatpush1.msra.mxu0 0.0
    %703 = vmatprep.subr.mxu0 0.0
    %704 = vmatpush1.msra.mxu0 0.0
    %705 = vmatprep.subr.mxu0 0.0
    %706 = vmatpush1.msra.mxu0 0.0
    %707 = vmatprep.subr.mxu0 0.0
    %708 = vmatpush1.msra.mxu0 0.0
    %709 = vmatprep.subr.mxu0 0.0
    %710 = vmatpush1.msra.mxu0 0.0
    %711 = vmatprep.subr.mxu0 0.0
    %712 = vmatpush1.msra.mxu0 0.0
    %713 = vmatprep.subr.mxu0 0.0
    %714 = vmatpush1.msra.mxu0 0.0
    %715 = vmatprep.subr.mxu0 0.0
    %716 = vmatpush1.msra.mxu0 0.0
    %717 = vmatprep.subr.mxu0 0.0
    %718 = vmatpush1.msra.mxu0 0.0
    %719 = vmatprep.subr.mxu0 0.0
    %720 = vmatpush1.msra.mxu0 0.0
    %721 = vmatprep.subr.mxu0 0.0
    %722 = vmatpush1.msra.mxu0 0.0
    %723 = vmatprep.subr.mxu0 0.0
    %724 = vmatpush1.msra.mxu0 0.0
    %725 = vmatprep.subr.mxu0 0.0
    %726 = vmatpush1.msra.mxu0 0.0
    %727 = vmatprep.subr.mxu0 0.0
    %728 = vmatpush1.msra.mxu0 0.0
    %729 = vmatprep.subr.mxu0 0.0
    %730 = vmatpush1.msra.mxu0 0.0
    %731 = vmatprep.mubr.f32.mxu0 0.0
    %732 = vmatmul.mubr.f32.gmra.mrb[0].mxu0 %v662
    %v733 = vpop.f32.mrb[0].mxu0
    %v734 = vadd.f32 %v654, %v733
    %v735 = vpop.f32.mrb[0].mxu0
    %736 = vmatprep.mubr.f32.mxu0 0.0
    %737 = vmatmul.mubr.f32.gmra.mrb[0].mxu0 %v665
    %v738 = vpop.f32.mrb[0].mxu0
    %v739 = vadd.f32 %v659, %v738
    %v740 = vpop.f32.mrb[0].mxu0
    %741 = vdwg.mxu0
    %742 = vst [vmem:[#allocation2] sm:$0xff] %v734
    %743 = vst [vmem:[#allocation2 + $0x8] sm:$0xff] %v739
    // Predicated region
    $region14: #{tpu_custom_call.1} parent=1 // pred_check
      _
    $region15: #{tpu_custom_call.1} parent=1 // pred_check_branch
      %745 = sbr.rel (0) target = $region17
    $region16: #{tpu_custom_call.1} parent=1 // pred_region
      %s747 = ssub.s32 256, 256
      %748 = vsyncadd [#allocation3], %s747
      %s749 = sshll.u32 [#allocation2], 4
      %s750 = int_to_ptr.vmem [resolvable:$true] %s749
      %755 = dma.vmem_to_hbm [thread:$0]  %s750, 256, %s3, [#allocation3], 128, 128, 8
    $region17: #{tpu_custom_call.1} parent=1 // pred_fallthru
      _
    // Predicated region
    $region18: #{tpu_custom_call.1} parent=1 // pred_check
      _
    $region19: #{tpu_custom_call.1} parent=1 // pred_check_branch
      %757 = sbr.rel (0) target = $region21
    $region20: #{tpu_custom_call.1} parent=1 // pred_region
      %758 = dma.done [#allocation3], 256
    $region21: #{tpu_custom_call.1} parent=1 // pred_fallthru
      _
    %759 = vsyncpa [#allocation3], 1

</llo_original>
